<compile_context>
chip_gen: v6e
topology: v6e:2x2x1
jax: 0.10.0
libtpu: 0.0.40
codegen_flags: <defaults>
</compile_context>

<pallas_src>
import functools

import jax
import jax.numpy as jnp
from jax.experimental import pallas as pl
from jax.experimental.pallas import tpu as pltpu


def _round_up(x: int, m: int) -> int:
    return (x + m - 1) // m * m


@functools.lru_cache(maxsize=1)
def _tpu_vmem_capacity_bytes() -> int:
    try:
        return int(pltpu.get_tpu_info().vmem_capacity_bytes)
    except Exception:
        return 64 << 20  # safe lower bound (v7x per-TensorCore VMEM)


def _largest_tile(dim: int) -> int:
    # dim is always a multiple of 128 here; prefer the biggest tile that divides it.
    for cand in (512, 256, 128):
        if dim % cand == 0:
            return cand
    return dim  # unreachable for lane-dense dims


# ---------------------------------------------------------------------------
# Path A: resident full weight (small / medium hidden dims).
# ---------------------------------------------------------------------------
def _fc_relu_resident_kernel(x_ref, w_ref, b_ref, o_ref):
    # x_ref: (tm, Kp)   w_ref: (Kp, Np) pre-transposed (K, N)   b_ref: (1, Np) f32
    y = jnp.dot(x_ref[...], w_ref[...], preferred_element_type=jnp.float32)
    y = y + b_ref[...]                                       # f32 bias epilogue
    o_ref[...] = jnp.maximum(y, 0.0).astype(o_ref.dtype)     # ReLU (double ReLU == single)


# ---------------------------------------------------------------------------
# Path B: K/N-tiled with f32 accumulator (large hidden dims / v7x VMEM budget).
# ---------------------------------------------------------------------------
def _fc_relu_tiled_kernel(x_ref, w_ref, b_ref, o_ref, acc_ref):
    k = pl.program_id(2)

    @pl.when(k == 0)
    def _():
        acc_ref[...] = jnp.zeros_like(acc_ref)

    acc_ref[...] += jnp.dot(x_ref[...], w_ref[...], preferred_element_type=jnp.float32)

    @pl.when(k == pl.num_programs(2) - 1)
    def _():
        # Bias + ReLU only in the finalize branch (never per k-step).
        o_ref[...] = jnp.maximum(acc_ref[...] + b_ref[...], 0.0).astype(o_ref.dtype)


def prepare_fc_params(weight, bias, compute_dtype=None):
    """One-time per-weight preparation (call OUTSIDE the per-step forward).

    weight: (out_features, in_features) PyTorch nn.Linear layout; bias: (out_features,).
    Returns (w_kn, b_row): w_kn = padded weight.T with shape (Kp, Np) in the compute
    dtype (standard MXU contraction, no in-kernel transpose), b_row = (1, Np) f32.
    """
    if compute_dtype is None:
        # bf16-native MXUs on v5e/v6e/v7x: bf16 matmul with f32 accumulation by default.
        compute_dtype = jnp.bfloat16 if weight.dtype == jnp.float32 else weight.dtype
    n_out, n_in = weight.shape
    kp = _round_up(max(n_in, 128), 128)
    np_ = _round_up(max(n_out, 128), 128)
    w_kn = weight.T.astype(compute_dtype)          # (K, N): lane-dense output dim last
    if (kp, np_) != (n_in, n_out):
        w_kn = jnp.pad(w_kn, ((0, kp - n_in), (0, np_ - n_out)))
    b = bias.astype(jnp.float32)
    if np_ != n_out:
        b = jnp.pad(b, (0, np_ - n_out))
    return w_kn, b.reshape(1, np_)


@functools.partial(jax.jit, static_argnames=("out_features", "force_tiled"))
def fc_hidden_linear_forward(x, w_kn, b_row, *, out_features=None, force_tiled=False):
    """relu(x @ W.T + b) for x: (..., H), with params prepared by prepare_fc_params."""
    orig_shape = x.shape
    K = orig_shape[-1]
    N = K if out_features is None else out_features
    x2d = x.reshape(-1, K)
    M = x2d.shape[0]
    out_dtype = x.dtype

    cdt = w_kn.dtype
    itemsize = jnp.dtype(cdt).itemsize
    out_isz = jnp.dtype(out_dtype).itemsize
    Kp, Np = w_kn.shape                              # already lane-dense padded

    vmem_cap = _tpu_vmem_capacity_bytes()
    vmem_budget = int(vmem_cap * 0.70)               # headroom for compiler scratch / sems
    single_core = vmem_cap >= (100 << 20)            # 128 MiB VMEM parts (v5e/v6e) = 1 TC

    sub = max(8, 32 // itemsize)                     # packed-sublane multiple (8 f32, 16 bf16)
    w_bytes = Kp * Np * itemsize

    # ---- Path A footprint (weight resident, single-buffered; x/out double-buffered). ----
    if single_core:
        tm_a = min(256, _round_up(M, sub))                       # 1 grid step for small M
    else:
        tm_a = min(256, _round_up(max(M // 2, sub), sub))        # >=2 tiles for v7x megacore
    resident_bytes = (w_bytes + Np * 4
                      + 2 * tm_a * Kp * itemsize
                      + 2 * tm_a * Np * out_isz)

    use_tiled = force_tiled or (resident_bytes > vmem_budget)

    if not use_tiled:
        # --- Path A: weight DMA'd once, resident in VMEM (constant index map). ---
        tm = tm_a
        Mp = _round_up(M, tm)
        x_p = x2d.astype(cdt)
        if (Mp, Kp) != (M, K):
            x_p = jnp.pad(x_p, ((0, Mp - M), (0, Kp - K)))
        vmem_limit = int(min(max(int(resident_bytes * 1.25), 32 << 20), vmem_budget))

        out = pl.pallas_call(
            _fc_relu_resident_kernel,
            out_shape=jax.ShapeDtypeStruct((Mp, Np), out_dtype),
            grid_spec=pltpu.PrefetchScalarGridSpec(
                num_scalar_prefetch=0,
                grid=(Mp // tm,),
                in_specs=[
                    pl.BlockSpec((tm, Kp), lambda i: (i, 0)),            # x row tile
                    pl.BlockSpec((Kp, Np), lambda i: (0, 0),
                                 pipeline_mode=pl.Buffered(1)),          # weight, resident
                    pl.BlockSpec((1, Np), lambda i: (0, 0),
                                 pipeline_mode=pl.Buffered(1)),          # bias, resident
                ],
                out_specs=pl.BlockSpec((tm, Np), lambda i: (i, 0)),
            ),
            compiler_params=pltpu.CompilerParams(
                dimension_semantics=("parallel",),
                vmem_limit_bytes=vmem_limit,
            ),
        )(x_p, w_kn, b_row)
    else:
        # --- Path B: K/N-tiled accumulator matmul, weight streamed as (tk, tn) blocks. ---
        tm = min(512, _round_up(M, sub))
        tn = _largest_tile(Np)
        tk = _largest_tile(Kp)
        Mp = _round_up(M, tm)
        x_p = x2d.astype(cdt)
        if (Mp, Kp) != (M, K):
            x_p = jnp.pad(x_p, ((0, Mp - M), (0, Kp - K)))

        n_kblocks = Kp // tk
        w_buffers = 3 if n_kblocks >= 3 else 2       # deeper buffering on the streamed weight
        needed = (2 * tm * tk * itemsize             # x blocks (double-buffered)
                  + w_buffers * tk * tn * itemsize   # weight blocks
                  + 2 * tn * 4                       # bias blocks
                  + 2 * tm * tn * out_isz            # output blocks
                  + tm * tn * 4)                     # f32 accumulator
        vmem_limit = int(min(max(int(needed * 1.5), 32 << 20), vmem_budget))

        if w_buffers == 3:
            w_spec = pl.BlockSpec((tk, tn), lambda i, j, k: (k, j),
                                  pipeline_mode=pl.Buffered(3))
        else:
            w_spec = pl.BlockSpec((tk, tn), lambda i, j, k: (k, j))

        out = pl.pallas_call(
            _fc_relu_tiled_kernel,
            out_shape=jax.ShapeDtypeStruct((Mp, Np), out_dtype),
            grid_spec=pltpu.PrefetchScalarGridSpec(
                num_scalar_prefetch=0,
                grid=(Mp // tm, Np // tn, n_kblocks),
                in_specs=[
                    pl.BlockSpec((tm, tk), lambda i, j, k: (i, k)),      # x (M, K) tile
                    w_spec,                                              # W (K, N) tile
                    pl.BlockSpec((1, tn), lambda i, j, k: (0, j)),       # bias slice
                ],
                out_specs=pl.BlockSpec((tm, tn), lambda i, j, k: (i, j)),
                scratch_shapes=[pltpu.VMEM((tm, tn), jnp.float32)],
            ),
            compiler_params=pltpu.CompilerParams(
                dimension_semantics=("parallel", "parallel", "arbitrary"),
                vmem_limit_bytes=vmem_limit,
            ),
        )(x_p, w_kn, b_row)

    return out[:M, :N].reshape(*orig_shape[:-1], N)


if __name__ == "__main__":
    hidden_dim = 32
    batch, seq = 2, 8  # -> 16 rows after flattening

    key = jax.random.PRNGKey(0)
    k_x, k_w, k_b = jax.random.split(key, 3)

    # Deterministic parameter init mimicking nn.Linear default (uniform +-1/sqrt(H)).
    bound = 1.0 / (hidden_dim ** 0.5)
    weight = jax.random.uniform(k_w, (hidden_dim, hidden_dim),
                                minval=-bound, maxval=bound, dtype=jnp.float32)
    bias = jax.random.uniform(k_b, (hidden_dim,),
                              minval=-bound, maxval=bound, dtype=jnp.float32)
    x = jax.random.normal(k_x, (batch, seq, hidden_dim), dtype=jnp.float32)

    # Reference: dense -> (dropout = identity) -> relu -> relu.
    ref = jnp.maximum(jnp.maximum(x @ weight.T + bias, 0.0), 0.0)

    # 1) Default path: bf16 matmul (f32 accumulation) on the bf16-native MXU,
    #    resident-weight fast path.
    w_bf16, b_p = prepare_fc_params(weight, bias)
    out = jax.block_until_ready(fc_hidden_linear_forward(x, w_bf16, b_p))
    assert out.shape == x.shape and out.dtype == x.dtype
    assert jnp.allclose(out, ref, atol=5e-2, rtol=5e-2)

    # 2) Exact f32 parity path (opt-in compute_dtype).
    w_f32, b_p32 = prepare_fc_params(weight, bias, compute_dtype=jnp.float32)
    out_f32 = jax.block_until_ready(fc_hidden_linear_forward(x, w_f32, b_p32))
    assert jnp.allclose(out_f32, ref, atol=1e-5, rtol=1e-5)

    # 3) K/N-tiled streaming path (the large-H / v7x path), exercised at small shapes.
    out_tiled = jax.block_until_ready(
        fc_hidden_linear_forward(x, w_f32, b_p32, force_tiled=True))
    assert jnp.allclose(out_tiled, ref, atol=1e-5, rtol=1e-5)

    print("KERNEL_OK")
</pallas_src>

<mosaic_0001>
module attributes {stable_mosaic.version = 11 : i64} {
  func.func @_fc_relu_resident_kernel(%arg0: i32, %arg1: memref<16x128xbf16, #tpu.memory_space<vmem>>, %arg2: memref<128x128xbf16, #tpu.memory_space<vmem>>, %arg3: memref<1x128xf32, #tpu.memory_space<vmem>>, %arg4: memref<16x128xf32, #tpu.memory_space<vmem>>) attributes {dimension_semantics = [#tpu.dimension_semantics<parallel>], iteration_bounds = array<i64: 1>, scalar_prefetch = 0 : i64, scratch_operands = 0 : i64, tpu.core_type = #tpu.core_type<tc>, window_params = [{transform_indices = @transform_0, window_bounds = array<i64: 16, 128>}, {pipeline_mode = #tpu.pipeline_mode<synchronous>, transform_indices = @transform_1, window_bounds = array<i64: 128, 128>}, {pipeline_mode = #tpu.pipeline_mode<synchronous>, transform_indices = @transform_2, window_bounds = array<i64: 1, 128>}, {transform_indices = @transform_3, window_bounds = array<i64: 16, 128>}]} {
    %c0 = arith.constant 0 : index
    %c0_0 = arith.constant 0 : index
    %0 = vector.load %arg1[%c0, %c0_0] : memref<16x128xbf16, #tpu.memory_space<vmem>>, vector<16x128xbf16>
    %c0_1 = arith.constant 0 : index
    %c0_2 = arith.constant 0 : index
    %1 = vector.load %arg2[%c0_1, %c0_2] : memref<128x128xbf16, #tpu.memory_space<vmem>>, vector<128x128xbf16>
    %cst = arith.constant dense<0.000000e+00> : vector<16x128xf32>
    %2 = tpu.matmul %0, %1, %cst {dimension_numbers = #tpu.dot_dimension_numbers<[1], [0], [0], [1], [0, 0, 1, 1], [], []>} : vector<16x128xbf16>, vector<128x128xbf16>, vector<16x128xf32> -> vector<16x128xf32>
    %c0_3 = arith.constant 0 : index
    %c0_4 = arith.constant 0 : index
    %3 = vector.load %arg3[%c0_3, %c0_4] : memref<1x128xf32, #tpu.memory_space<vmem>>, vector<1x128xf32>
    %4 = vector.broadcast %3 : vector<1x128xf32> to vector<16x128xf32>
    %5 = arith.addf %2, %4 : vector<16x128xf32>
    %cst_5 = arith.constant 0.000000e+00 : f32
    %6 = vector.broadcast %cst_5 : f32 to vector<16x128xf32>
    %7 = arith.maximumf %5, %6 : vector<16x128xf32>
    %c0_6 = arith.constant 0 : index
    %c0_7 = arith.constant 0 : index
    %8 = vector.load %arg4[%c0_6, %c0_7] : memref<16x128xf32, #tpu.memory_space<vmem>>, vector<16x128xf32>
    tpu.vector_store %arg4[%c0_6, %c0_7], %7 {strides = array<i32>} : memref<16x128xf32, #tpu.memory_space<vmem>>, vector<16x128xf32>,
    return
  }
  func.func @transform_0(%arg0: i32) -> (i32, i32) {
    %c0_i32 = arith.constant 0 : i32
    %c0_i32_0 = arith.constant 0 : i32
    return %arg0, %c0_i32 : i32, i32
  }
  func.func @transform_1(%arg0: i32) -> (i32, i32) {
    %c0_i32 = arith.constant 0 : i32
    %c0_i32_0 = arith.constant 0 : i32
    %c0_i32_1 = arith.constant 0 : i32
    return %c0_i32, %c0_i32_0 : i32, i32
  }
  func.func @transform_2(%arg0: i32) -> (i32, i32) {
    %c0_i32 = arith.constant 0 : i32
    %c0_i32_0 = arith.constant 0 : i32
    %c0_i32_1 = arith.constant 0 : i32
    return %c0_i32, %c0_i32_0 : i32, i32
  }
  func.func @transform_3(%arg0: i32) -> (i32, i32) {
    %c0_i32 = arith.constant 0 : i32
    %c0_i32_0 = arith.constant 0 : i32
    return %arg0, %c0_i32 : i32, i32
  }
}

</mosaic_0001>

<llo_original>
// kernel: fc_hidden_linear_forward.1
$region0: #{fc_hidden_linear_forward.1}
  #allocation0 [shape = 'u32[]', space=smem, size = 0x4, offset = 0x4, fixed_abs, tag = 'smem constant byte address 0x4 - core index']
  #allocation1 [shape = 'u32[144,128]{1,0:T(1,128)}', space=vmem, size = 0x12000, scoped, tag = 'internal scratch']
  %s0 = inlined_call_operand.vmem [shape: bf16[16,128], index: 0, kind: input, shape index: {}]
  %s1 = inlined_call_operand.hbm [shape: bf16[128,128], index: 1, kind: input, shape index: {}]
  %s2 = inlined_call_operand.vmem [shape: f32[1,128], index: 2, kind: input, shape index: {}]
  %s3 = inlined_call_operand.vmem [shape: f32[16,128], index: 3, kind: output, shape index: {}]
  %s4 = sld [smem:[#allocation0]]
  $region26: #{fc_hidden_linear_forward.1} parent=0
    _
  %s6 = ssub.s32 1, %s4
  %s7 = scalar_select 0, %s6, %s4
  $region1: #{fc_hidden_linear_forward.1} parent=0
    #allocation2 [shape = 'u8[32768]{0}', space=vmem, size = 0x8000, scoped, tag = 'input window, operand 1, single buffered']
    #allocation3 [shape = 's32[1]{0}', space=sflag, size = 0x4, scoped, tag = 'scoped memory for fc_hidden_linear_forward.1']
    %8 = vsyncpa [#allocation3], 0
    // Predicated region
    $region2: #{fc_hidden_linear_forward.1} parent=1 // pred_check
      _
    $region3: #{fc_hidden_linear_forward.1} parent=1 // pred_check_branch
      %10 = sbr.rel (0) target = $region5
    $region4: #{fc_hidden_linear_forward.1} parent=1 // pred_region
      _
    $region5: #{fc_hidden_linear_forward.1} parent=1 // pred_fallthru
      _
    // Predicated region
    $region6: #{fc_hidden_linear_forward.1} parent=1 // pred_check
      _
    $region7: #{fc_hidden_linear_forward.1} parent=1 // pred_check_branch
      %12 = sbr.rel (0) target = $region9
    $region8: #{fc_hidden_linear_forward.1} parent=1 // pred_region
      %s14 = ssub.s32 1024, 1024
      %15 = vsyncadd [#allocation3], %s14
      %s16 = sshll.u32 [#allocation2], 4
      %s17 = int_to_ptr.vmem [resolvable:$true] %s16
      %22 = dma.hbm_to_vmem [thread:$0]  %s1, 1024, %s17, [#allocation3], 64, 64, 4
    $region9: #{fc_hidden_linear_forward.1} parent=1 // pred_fallthru
      _
    // Predicated region
    $region10: #{fc_hidden_linear_forward.1} parent=1 // pred_check
      _
    $region11: #{fc_hidden_linear_forward.1} parent=1 // pred_check_branch
      %24 = sbr.rel (0) target = $region13
    $region12: #{fc_hidden_linear_forward.1} parent=1 // pred_region
      _
    $region13: #{fc_hidden_linear_forward.1} parent=1 // pred_fallthru
      _
    // Predicated region
    $region14: #{fc_hidden_linear_forward.1} parent=1 // pred_check
      _
    $region15: #{fc_hidden_linear_forward.1} parent=1 // pred_check_branch
      %26 = sbr.rel (0) target = $region17
    $region16: #{fc_hidden_linear_forward.1} parent=1 // pred_region
      %27 = dma.done [#allocation3], 1024
    $region17: #{fc_hidden_linear_forward.1} parent=1 // pred_fallthru
      _
    %v29 = vld [vmem:[%s0] sm:$0xf]
    %v30 = vld [vmem:[%s0 + $0x4] sm:$0xf]
    %v31 = vld [vmem:[#allocation2] sm:$0xf]
    %v32 = vld [vmem:[#allocation2 + $0x4] sm:$0xf]
    %v33 = vld [vmem:[#allocation2 + $0x8] sm:$0xf]
    %v34 = vld [vmem:[#allocation2 + $0xc] sm:$0xf]
    %v35 = vld [vmem:[#allocation2 + $0x10] sm:$0xf]
    %v36 = vld [vmem:[#allocation2 + $0x14] sm:$0xf]
    %v37 = vld [vmem:[#allocation2 + $0x18] sm:$0xf]
    %v38 = vld [vmem:[#allocation2 + $0x1c] sm:$0xf]
    %v39 = vld [vmem:[#allocation2 + $0x20] sm:$0xf]
    %v40 = vld [vmem:[#allocation2 + $0x24] sm:$0xf]
    %v41 = vld [vmem:[#allocation2 + $0x28] sm:$0xf]
    %v42 = vld [vmem:[#allocation2 + $0x2c] sm:$0xf]
    %v43 = vld [vmem:[#allocation2 + $0x30] sm:$0xf]
    %v44 = vld [vmem:[#allocation2 + $0x34] sm:$0xf]
    %v45 = vld [vmem:[#allocation2 + $0x38] sm:$0xf]
    %v46 = vld [vmem:[#allocation2 + $0x3c] sm:$0xf]
    %v47 = vld [vmem:[%s2] sm:$0x1]
    %v49 = vlaneseq
    %v50 = vshrl.u32 %v49, 7
    %v51 = vsub.s32 0, %v50
    %v52 = vrot.slane %v47, %v51
    %v56 = vunpack.c.l.b16 %v29
    %v57 = vunpack.c.l.b16 %v30
    %v58 = vpack.c.b16 %v57, %v56
    %v76 = vunpack.c.l.b16 %v31
    %v77 = vunpack.c.l.b16 %v32
    %v78 = vunpack.c.l.b16 %v33
    %v79 = vunpack.c.l.b16 %v34
    %v80 = vunpack.c.l.b16 %v35
    %v81 = vunpack.c.l.b16 %v36
    %v82 = vunpack.c.l.b16 %v37
    %v83 = vunpack.c.l.b16 %v38
    %v84 = vunpack.c.l.b16 %v39
    %v85 = vunpack.c.l.b16 %v40
    %v86 = vunpack.c.l.b16 %v41
    %v87 = vunpack.c.l.b16 %v42
    %v88 = vunpack.c.l.b16 %v43
    %v89 = vunpack.c.l.b16 %v44
    %v90 = vunpack.c.l.b16 %v45
    %v91 = vunpack.c.l.b16 %v46
    %v92 = vpack.c.b16 %v77, %v76
    %v93 = vpack.c.b16 %v79, %v78
    %v94 = vpack.c.b16 %v81, %v80
    %v95 = vpack.c.b16 %v83, %v82
    %v96 = vpack.c.b16 %v85, %v84
    %v97 = vpack.c.b16 %v87, %v86
    %v98 = vpack.c.b16 %v89, %v88
    %v99 = vpack.c.b16 %v91, %v90
    %108 = vmatprep.subr.bf16.mxu0 0
    %109 = vmatpush1.bf16.msra.mxu0 %v99
    %110 = vmatprep.subr.bf16.mxu0 0
    %111 = vmatpush1.bf16.msra.mxu0 %v98
    %112 = vmatprep.subr.bf16.mxu0 0
    %113 = vmatpush1.bf16.msra.mxu0 %v97
    %114 = vmatprep.subr.bf16.mxu0 0
    %115 = vmatpush1.bf16.msra.mxu0 %v96
    %116 = vmatprep.subr.bf16.mxu0 0
    %117 = vmatpush1.bf16.msra.mxu0 %v95
    %118 = vmatprep.subr.bf16.mxu0 0
    %119 = vmatpush1.bf16.msra.mxu0 %v94
    %120 = vmatprep.subr.bf16.mxu0 0
    %121 = vmatpush1.bf16.msra.mxu0 %v93
    %122 = vmatprep.subr.bf16.mxu0 0
    %123 = vmatpush1.bf16.msra.mxu0 %v92
    %124 = vmatprep.subr.bf16.mxu0 0
    %125 = vmatpush2.bf16.msra.mxu0 0
    %126 = vmatprep.subr.bf16.mxu0 0
    %127 = vmatpush2.bf16.msra.mxu0 0
    %128 = vmatprep.subr.bf16.mxu0 0
    %129 = vmatpush2.bf16.msra.mxu0 0
    %130 = vmatprep.subr.bf16.mxu0 0
    %131 = vmatpush2.bf16.msra.mxu0 0
    %132 = vmatprep.subr.bf16.mxu0 0
    %133 = vmatpush2.bf16.msra.mxu0 0
    %134 = vmatprep.subr.bf16.mxu0 0
    %135 = vmatpush2.bf16.msra.mxu0 0
    %136 = vmatprep.subr.bf16.mxu0 0
    %137 = vmatpush2.bf16.msra.mxu0 0
    %138 = vmatprep.subr.bf16.mxu0 0
    %139 = vmatpush2.bf16.msra.mxu0 0
    %140 = vmatprep.mubr.bf16.mxu0 0
    %141 = vmatmul.mubr.bf16.gmra.mxu0 %v58
    %v142 = vpop.f32.mrf.mxu0
    %v143 = vadd.f32 %v52, %v142
    %v144 = vpop.f32.mrf.mxu0
    %v145 = vpop.f32.mrf.mxu0
    %v146 = vadd.f32 %v52, %v145
    %v147 = vpop.f32.mrf.mxu0
    %148 = vdwg.mxu0
    %v149 = vmax.f32 %v143, 0.0
    %v150 = vmax.f32 %v146, 0.0
    %151 = vst [vmem:[%s3] sm:$0xff] %v149
    %152 = vst [vmem:[%s3 + $0x8] sm:$0xff] %v150
    // Predicated region
    $region18: #{fc_hidden_linear_forward.1} parent=1 // pred_check
      _
    $region19: #{fc_hidden_linear_forward.1} parent=1 // pred_check_branch
      %154 = sbr.rel (0) target = $region21
    $region20: #{fc_hidden_linear_forward.1} parent=1 // pred_region
      _
    $region21: #{fc_hidden_linear_forward.1} parent=1 // pred_fallthru
      _
    // Predicated region
    $region22: #{fc_hidden_linear_forward.1} parent=1 // pred_check
      _
    $region23: #{fc_hidden_linear_forward.1} parent=1 // pred_check_branch
      %156 = sbr.rel (0) target = $region25
    $region24: #{fc_hidden_linear_forward.1} parent=1 // pred_region
      _
    $region25: #{fc_hidden_linear_forward.1} parent=1 // pred_fallthru
      _
    %157 = vsyncpa [#allocation3], 1

</llo_original>
